<compile_context>
chip_gen: v5e
topology: v5e:2x2
jax: 0.10.0
libtpu: 0.0.40
codegen_flags: <defaults>
</compile_context>

<pallas_src>
import jax
import jax.numpy as jnp
from jax.experimental import pallas as pl
from jax.experimental.pallas import tpu as pltpu


def mlp_kernel(x_ref, w1t_ref, b1_ref, w2t_ref, b2_ref, o_ref):
    # x_ref:   [TB, IN]   natural PyTorch layout, batch on sublanes
    # w1t_ref: [IN, HID]  fc1.weight^T, resident in VMEM
    # b1_ref:  [1, HID]   fc1.bias (broadcast over batch rows)
    # w2t_ref: [HID, 1]   fc2.weight^T, resident in VMEM
    # b2_ref:  SMEM (1,1) fc2.bias scalar
    # o_ref:   [TB, 1]
    h = jnp.dot(x_ref[...], w1t_ref[...],
                preferred_element_type=jnp.float32)            # [TB, HID] on MXU
    h = jnp.maximum(h + b1_ref[...], 0.0)                      # bias + ReLU (VPU)
    y = jnp.dot(h, w2t_ref[...],
                preferred_element_type=jnp.float32)            # [TB, 1] matvec on MXU
    o_ref[...] = (y + b2_ref[0, 0]).astype(o_ref.dtype)


def simple_nn_forward(x, w1, b1, w2, b2, *, batch_tile=4096, use_pallas=None):
    """Forward of SimpleNN: relu(x @ W1^T + b1) @ W2^T + b2.

    x:  [B, 10] (f32 or bf16 — bf16 halves the dominant HBM read)
    w1: [20, 10], b1: [20]   (fc1.weight / fc1.bias, PyTorch layout)
    w2: [1, 20],  b2: [1]    (fc2.weight / fc2.bias, PyTorch layout)
    returns [B, 1]
    """
    B, IN = x.shape
    HID = w1.shape[0]
    OUT = w2.shape[0]

    # Small-batch guard: kernel launch + layout cost beats the 3-op XLA path
    # only once batch tiles amortise per-step overhead.
    if use_pallas is None:
        use_pallas = B >= 1024
    if not use_pallas:
        h = jnp.maximum(x @ w1.T + b1, 0.0)
        return (h @ w2.T + b2).astype(x.dtype)

    # Batch tile: sublane axis, so only a multiple of 8 is required; cap at
    # round_up(B, 8) so tiny batches are not padded out to the full tile.
    tb = min(int(batch_tile), ((B + 7) // 8) * 8)
    tb = max(8, (tb // 8) * 8)
    grid_b = pl.cdiv(B, tb)
    Bp = tb * grid_b

    # Pad only when B does not divide the tile (no-op at production sizes).
    xp = x if Bp == B else jnp.pad(x, ((0, Bp - B), (0, 0)))

    # Tiny one-off weight reshapes (200 / 20 elements — negligible).
    w1t = w1.T.astype(x.dtype)                  # [IN, HID]; matches x for MXU feed
    b1r = b1.reshape(1, HID).astype(jnp.float32)
    w2t = w2.T.astype(jnp.float32)              # [HID, OUT]
    b2s = b2.reshape(1, 1).astype(jnp.float32)

    # VMEM budget: double-buffered x/out tiles + resident weights.  Only raise
    # the scoped limit if a huge tile sweep would exceed the smallest default.
    itemsize = jnp.dtype(x.dtype).itemsize
    vmem_bytes = 2 * tb * (IN + OUT) * itemsize + 2 * 4 * (IN * HID + HID + HID * OUT + 1)
    cp_kwargs = {"dimension_semantics": ("parallel",)}   # megacore split on v7x (grid >= 2)
    if vmem_bytes > 12 * 1024 * 1024:
        cp_kwargs["vmem_limit_bytes"] = min(4 * vmem_bytes, 96 * 1024 * 1024)

    out = pl.pallas_call(
        mlp_kernel,
        out_shape=jax.ShapeDtypeStruct((Bp, OUT), x.dtype),
        grid=(grid_b,),
        in_specs=[
            pl.BlockSpec((tb, IN), lambda i: (i, 0)),            # x tile (streamed)
            pl.BlockSpec((IN, HID), lambda i: (0, 0)),           # W1^T (resident)
            pl.BlockSpec((1, HID), lambda i: (0, 0)),            # b1 (resident)
            pl.BlockSpec((HID, OUT), lambda i: (0, 0)),          # W2^T (resident)
            pl.BlockSpec(memory_space=pltpu.MemorySpace.SMEM),   # b2 scalar
        ],
        out_specs=pl.BlockSpec((tb, OUT), lambda i: (i, 0)),
        compiler_params=pltpu.CompilerParams(**cp_kwargs),
    )(xp, w1t, b1r, w2t, b2s)

    return out if Bp == B else out[:B]


if __name__ == "__main__":
    key = jax.random.PRNGKey(0)
    k_x, k_w1, k_b1, k_w2, k_b2 = jax.random.split(key, 5)

    B, IN, HID, OUT = 8, 10, 20, 1

    # Parameters in PyTorch-native layouts ([out_features, in_features]).
    x = jax.random.normal(k_x, (B, IN), dtype=jnp.float32)
    w1 = jax.random.normal(k_w1, (HID, IN), dtype=jnp.float32) * 0.1
    b1 = jax.random.normal(k_b1, (HID,), dtype=jnp.float32) * 0.1
    w2 = jax.random.normal(k_w2, (OUT, HID), dtype=jnp.float32) * 0.1
    b2 = jax.random.normal(k_b2, (OUT,), dtype=jnp.float32) * 0.1

    # Pure-JAX reference of the PyTorch forward.
    ref = jnp.maximum(x @ w1.T + b1, 0.0) @ w2.T + b2

    # Force the Pallas path at this tiny demo batch (auto heuristic would
    # route B=8 to plain XLA).
    out = simple_nn_forward(x, w1, b1, w2, b2, use_pallas=True)
    out = jax.block_until_ready(out)
    assert out.shape == (B, OUT)
    assert jnp.allclose(out, ref, atol=1e-5, rtol=1e-5)

    # bf16 streaming path (halved HBM read of x); f32 accumulation in-kernel.
    out_bf16 = simple_nn_forward(x.astype(jnp.bfloat16), w1, b1, w2, b2, use_pallas=True)
    out_bf16 = jax.block_until_ready(out_bf16)
    assert jnp.allclose(out_bf16.astype(jnp.float32), ref, atol=5e-2, rtol=5e-2)

    # Multi-tile grid + padded tail (B not a multiple of the tile).
    B2 = 300
    x2 = jax.random.normal(k_x, (B2, IN), dtype=jnp.float32)
    ref2 = jnp.maximum(x2 @ w1.T + b1, 0.0) @ w2.T + b2
    out2 = simple_nn_forward(x2, w1, b1, w2, b2, batch_tile=128, use_pallas=True)
    out2 = jax.block_until_ready(out2)
    assert out2.shape == (B2, OUT)
    assert jnp.allclose(out2, ref2, atol=1e-5, rtol=1e-5)

    print("KERNEL_OK")
</pallas_src>

<mosaic_0001>
module attributes {stable_mosaic.version = 11 : i64} {
  func.func @mlp_kernel(%arg0: i32, %arg1: memref<8x10xf32, #tpu.memory_space<vmem>>, %arg2: memref<10x20xf32, #tpu.memory_space<vmem>>, %arg3: memref<1x20xf32, #tpu.memory_space<vmem>>, %arg4: memref<20x1xf32, #tpu.memory_space<vmem>>, %arg5: memref<1x1xf32, #tpu.memory_space<smem>>, %arg6: memref<8x1xf32, #tpu.memory_space<vmem>>) attributes {dimension_semantics = [#tpu.dimension_semantics<parallel>], iteration_bounds = array<i64: 1>, scalar_prefetch = 0 : i64, scratch_operands = 0 : i64, tpu.core_type = #tpu.core_type<tc>, window_params = [{transform_indices = @transform_0, window_bounds = array<i64: 8, 10>}, {pipeline_mode = #tpu.pipeline_mode<synchronous>, transform_indices = @transform_1, window_bounds = array<i64: 10, 20>}, {pipeline_mode = #tpu.pipeline_mode<synchronous>, transform_indices = @transform_2, window_bounds = array<i64: 1, 20>}, {pipeline_mode = #tpu.pipeline_mode<synchronous>, transform_indices = @transform_3, window_bounds = array<i64: 20, 1>}, {transform_indices = @transform_4, window_bounds = array<i64: 1, 1>}, {transform_indices = @transform_5, window_bounds = array<i64: 8, 1>}]} {
    %c0 = arith.constant 0 : index
    %c0_0 = arith.constant 0 : index
    %0 = vector.load %arg1[%c0, %c0_0] : memref<8x10xf32, #tpu.memory_space<vmem>>, vector<8x10xf32>
    %c0_1 = arith.constant 0 : index
    %c0_2 = arith.constant 0 : index
    %1 = vector.load %arg2[%c0_1, %c0_2] : memref<10x20xf32, #tpu.memory_space<vmem>>, vector<10x20xf32>
    %cst = arith.constant dense<0.000000e+00> : vector<8x20xf32>
    %2 = tpu.matmul %0, %1, %cst {dimension_numbers = #tpu.dot_dimension_numbers<[1], [0], [0], [1], [0, 0, 1, 1], [], []>} : vector<8x10xf32>, vector<10x20xf32>, vector<8x20xf32> -> vector<8x20xf32>
    %c0_3 = arith.constant 0 : index
    %c0_4 = arith.constant 0 : index
    %3 = vector.load %arg3[%c0_3, %c0_4] : memref<1x20xf32, #tpu.memory_space<vmem>>, vector<1x20xf32>
    %4 = vector.broadcast %3 : vector<1x20xf32> to vector<8x20xf32>
    %5 = arith.addf %2, %4 : vector<8x20xf32>
    %cst_5 = arith.constant 0.000000e+00 : f32
    %6 = vector.broadcast %cst_5 : f32 to vector<8x20xf32>
    %7 = arith.maximumf %5, %6 : vector<8x20xf32>
    %c0_6 = arith.constant 0 : index
    %c0_7 = arith.constant 0 : index
    %8 = vector.load %arg4[%c0_6, %c0_7] : memref<20x1xf32, #tpu.memory_space<vmem>>, vector<20x1xf32>
    %cst_8 = arith.constant dense<0.000000e+00> : vector<8x1xf32>
    %9 = tpu.matmul %7, %8, %cst_8 {dimension_numbers = #tpu.dot_dimension_numbers<[1], [0], [0], [1], [0, 0, 1, 1], [], []>} : vector<8x20xf32>, vector<20x1xf32>, vector<8x1xf32> -> vector<8x1xf32>
    %c0_9 = arith.constant 0 : index
    %c0_10 = arith.constant 0 : index
    %10 = memref.load %arg5[%c0_9, %c0_10] : memref<1x1xf32, #tpu.memory_space<smem>>
    %11 = vector.broadcast %10 : f32 to vector<8x1xf32>
    %12 = arith.addf %9, %11 : vector<8x1xf32>
    %c0_11 = arith.constant 0 : index
    %c0_12 = arith.constant 0 : index
    %13 = vector.load %arg6[%c0_11, %c0_12] : memref<8x1xf32, #tpu.memory_space<vmem>>, vector<8x1xf32>
    tpu.vector_store %arg6[%c0_11, %c0_12], %12 {strides = array<i32>} : memref<8x1xf32, #tpu.memory_space<vmem>>, vector<8x1xf32>,
    return
  }
  func.func @transform_0(%arg0: i32) -> (i32, i32) {
    %c0_i32 = arith.constant 0 : i32
    %c0_i32_0 = arith.constant 0 : i32
    return %arg0, %c0_i32 : i32, i32
  }
  func.func @transform_1(%arg0: i32) -> (i32, i32) {
    %c0_i32 = arith.constant 0 : i32
    %c0_i32_0 = arith.constant 0 : i32
    %c0_i32_1 = arith.constant 0 : i32
    return %c0_i32, %c0_i32_0 : i32, i32
  }
  func.func @transform_2(%arg0: i32) -> (i32, i32) {
    %c0_i32 = arith.constant 0 : i32
    %c0_i32_0 = arith.constant 0 : i32
    %c0_i32_1 = arith.constant 0 : i32
    return %c0_i32, %c0_i32_0 : i32, i32
  }
  func.func @transform_3(%arg0: i32) -> (i32, i32) {
    %c0_i32 = arith.constant 0 : i32
    %c0_i32_0 = arith.constant 0 : i32
    %c0_i32_1 = arith.constant 0 : i32
    return %c0_i32, %c0_i32_0 : i32, i32
  }
  func.func @transform_4(%arg0: i32) -> (i32, i32) {
    %c0_i32 = arith.constant 0 : i32
    %c0_i32_0 = arith.constant 0 : i32
    %c0_i32_1 = arith.constant 0 : i32
    return %c0_i32, %c0_i32_0 : i32, i32
  }
  func.func @transform_5(%arg0: i32) -> (i32, i32) {
    %c0_i32 = arith.constant 0 : i32
    %c0_i32_0 = arith.constant 0 : i32
    return %arg0, %c0_i32 : i32, i32
  }
}

</mosaic_0001>

<llo_original>
// kernel: tpu_custom_call.1
$region0: #{tpu_custom_call.1}
  #allocation0 [shape = 'u32[]', space=smem, size = 0x4, offset = 0x4, fixed_abs, tag = 'smem constant byte address 0x4 - core index']
  #allocation1 [shape = 'u32[72,128]{1,0:T(1,128)}', space=vmem, size = 0x9000, scoped, tag = 'internal scratch']
  #allocation2 [shape = 'f32[1,1]{1,0:T(1,128)S(6)}', space=smem, size = 0x200, scoped, tag = 'scoped memory for tpu_custom_call.1']
  %s0 = inlined_call_operand.vmem [shape: f32[8,10], index: 0, kind: input, shape index: {}]
  %s1 = inlined_call_operand.vmem [shape: f32[10,20], index: 1, kind: input, shape index: {}]
  %s2 = inlined_call_operand.vmem [shape: f32[1,20], index: 2, kind: input, shape index: {}]
  %s3 = inlined_call_operand.vmem [shape: f32[20,1], index: 3, kind: input, shape index: {}]
  %s4 = inlined_call_operand.<no memory space> [shape: f32[1,1], index: 4, kind: input, shape index: {}]
  %s5 = inlined_call_operand.vmem [shape: f32[8,1], index: 5, kind: output, shape index: {}]
  %s6 = sld [smem:[#allocation0]]
  $region30: #{tpu_custom_call.1} parent=0
    _
  %s8 = ssub.s32 1, %s6
  %s9 = scalar_select 0, %s8, %s6
  %10 = sst [smem:[#allocation2]] %s4
  // Predicated region
  $region2: #{tpu_custom_call.1} parent=0 // pred_check
    _
  $region3: #{tpu_custom_call.1} parent=0 // pred_check_branch
    %12 = sbr.rel (0) target = $region5
  $region4: #{tpu_custom_call.1} parent=0 // pred_region
    _
  $region5: #{tpu_custom_call.1} parent=0 // pred_fallthru
    _
  // Predicated region
  $region6: #{tpu_custom_call.1} parent=0 // pred_check
    _
  $region7: #{tpu_custom_call.1} parent=0 // pred_check_branch
    %14 = sbr.rel (0) target = $region9
  $region8: #{tpu_custom_call.1} parent=0 // pred_region
    _
  $region9: #{tpu_custom_call.1} parent=0 // pred_fallthru
    _
  // Predicated region
  $region10: #{tpu_custom_call.1} parent=0 // pred_check
    _
  $region11: #{tpu_custom_call.1} parent=0 // pred_check_branch
    %16 = sbr.rel (0) target = $region13
  $region12: #{tpu_custom_call.1} parent=0 // pred_region
    _
  $region13: #{tpu_custom_call.1} parent=0 // pred_fallthru
    _
  // Predicated region
  $region14: #{tpu_custom_call.1} parent=0 // pred_check
    _
  $region15: #{tpu_custom_call.1} parent=0 // pred_check_branch
    %18 = sbr.rel (0) target = $region17
  $region16: #{tpu_custom_call.1} parent=0 // pred_region
    _
  $region17: #{tpu_custom_call.1} parent=0 // pred_fallthru
    _
  // Predicated region
  $region18: #{tpu_custom_call.1} parent=0 // pred_check
    _
  $region19: #{tpu_custom_call.1} parent=0 // pred_check_branch
    %20 = sbr.rel (0) target = $region21
  $region20: #{tpu_custom_call.1} parent=0 // pred_region
    _
  $region21: #{tpu_custom_call.1} parent=0 // pred_fallthru
    _
  %v21 = vld [vmem:[%s0] sm:$0xff]
  %v22 = vld [vmem:[%s1] sm:$0xff]
  %v23 = vld [vmem:[%s1 + $0x8] sm:$0x3]
  %v24 = vld [vmem:[%s2] sm:$0x1]
  %v26 = vperm.slane %v24, 0
  %vm28 = vcmask 80896
  %v30 = vsel %vm28, %v21, 0
  %vm32 = vcmask 1041408
  %v34 = vsel %vm32, %v23, 0
  %36 = vmatpush.msra.mxu0 0.0
  %37 = vmatpush.msra.mxu0 0.0
  %38 = vmatpush.msra.mxu0 0.0
  %39 = vmatpush.msra.mxu0 0.0
  %40 = vmatpush.msra.mxu0 0.0
  %41 = vmatpush.msra.mxu0 0.0
  %42 = vmatpush.msra.mxu0 0.0
  %43 = vmatpush.msra.mxu0 0.0
  %44 = vmatpush.msra.mxu0 0.0
  %45 = vmatpush.msra.mxu0 0.0
  %46 = vmatpush.msra.mxu0 0.0
  %47 = vmatpush.msra.mxu0 0.0
  %48 = vmatpush.msra.mxu0 0.0
  %49 = vmatpush.msra.mxu0 0.0
  %50 = vmatpush.msra.mxu0 %v34
  %51 = vmatpush.msra.mxu0 %v22
  %52 = vmatmul.f32.gmra.mxu0 %v30
  %v53 = vpop.f32.mrf.mxu0
  %v54 = vadd.f32 %v26, %v53
  %55 = vdwg.mxu0
  %v56 = vmax.f32 %v54, 0.0
  %v57 = vld [vmem:[%s3] sm:$0xff]
  %v58 = vld [vmem:[%s3 + $0x8] sm:$0xff]
  %v59 = vld [vmem:[%s3 + $0x10] sm:$0xf]
  %s60 = sld [smem:[#allocation2]]
  %v61 = vstv %s60
  %vm62 = vcmask 162816
  %v64 = vsel %vm62, %v56, 0
  %vm66 = vcmask 1043456
  %v68 = vsel %vm66, %v59, 0
  %70 = vmatpush.msra.mxu0 0.0
  %71 = vmatpush.msra.mxu0 0.0
  %72 = vmatpush.msra.mxu0 0.0
  %73 = vmatpush.msra.mxu0 0.0
  %74 = vmatpush.msra.mxu0 0.0
  %75 = vmatpush.msra.mxu0 0.0
  %76 = vmatpush.msra.mxu0 0.0
  %77 = vmatpush.msra.mxu0 0.0
  %78 = vmatpush.msra.mxu0 0.0
  %79 = vmatpush.msra.mxu0 0.0
  %80 = vmatpush.msra.mxu0 0.0
  %81 = vmatpush.msra.mxu0 0.0
  %82 = vmatpush.msra.mxu0 0.0
  %83 = vmatpush.msra.mxu0 %v68
  %84 = vmatpush.msra.mxu0 %v58
  %85 = vmatpush.msra.mxu0 %v57
  %86 = vmatmul.f32.gmra.mxu0 %v64
  %v87 = vpop.f32.mrf.mxu0
  %v88 = vadd.f32 %v61, %v87
  %89 = vdwg.mxu0
  %vm90 = vcmask 7168
  %91 = vst.msk [vmem:[%s5] sm:$0xff] %vm90, %v88
  // Predicated region
  $region22: #{tpu_custom_call.1} parent=0 // pred_check
    _
  $region23: #{tpu_custom_call.1} parent=0 // pred_check_branch
    %93 = sbr.rel (0) target = $region25
  $region24: #{tpu_custom_call.1} parent=0 // pred_region
    _
  $region25: #{tpu_custom_call.1} parent=0 // pred_fallthru
    _
  // Predicated region
  $region26: #{tpu_custom_call.1} parent=0 // pred_check
    _
  $region27: #{tpu_custom_call.1} parent=0 // pred_check_branch
    %95 = sbr.rel (0) target = $region29
  $region28: #{tpu_custom_call.1} parent=0 // pred_region
    _
  $region29: #{tpu_custom_call.1} parent=0 // pred_fallthru
    _

</llo_original>
